<compile_context>
chip_gen: v7x
topology: tpu7x:2x2x1
jax: 0.10.0
libtpu: 0.0.40
codegen_flags: <defaults>
</compile_context>

<pallas_src>
import jax
import jax.numpy as jnp
from jax.experimental import pallas as pl
from jax.experimental.pallas import tpu as pltpu


# ------------------------------- fused kernel -------------------------------
def _nprf_fused_kernel(q_ref, d_ref, ds_ref, w1b_ref, rows_ref, w2b_ref,
                       scal_ref, out_ref):
    """One grid step == one query.

    Shapes (leading query dim squeezed away by the BlockSpec):
      q_ref    (M, T)        query-gate input, lane-major over topk terms
      d_ref    (M, T*H)      histograms, (term, hist) flattened on lanes
      ds_ref   (1, M)        doc scores
      w1b_ref  (T*H, T*K)    kron(I_T, W1)  block-diagonal first MLP layer
      rows_ref (2, T*K)      row 0: b1 tiled T times; row 1[:M]: wd_gate * wf
      w2b_ref  (T*K, T)      kron(I_T, W2)  block-diagonal second MLP layer
      scal_ref (1, 4) SMEM   [wq_gate, b2, bf, 0]
      out_ref  (M, 1)
    """
    M, _ = q_ref.shape
    wq = scal_ref[0, 0]
    b2 = scal_ref[0, 1]
    bf = scal_ref[0, 2]

    rows = rows_ref[...]                       # (2, T*K)
    b1_row = rows[0:1, :]                      # (1, T*K)
    wf_row = rows[1:2, 0:M]                    # (1, M)   == wd_gate * wf

    # ---- hidden_layers: output directly in (M, T) lane-major layout ----
    h = jnp.tanh(
        jnp.dot(d_ref[...], w1b_ref[...], preferred_element_type=jnp.float32)
        + b1_row)                                                       # (M, T*K)
    s = jnp.dot(h, w2b_ref[...], preferred_element_type=jnp.float32) + b2   # (M, T)

    # ---- query gate + per-doc softmax over topk (lane reductions) ----
    qg = q_ref[...] * wq                                    # (M, T)
    qg = qg - jnp.max(qg, axis=1, keepdims=True)            # per-doc max (stable)
    e = jnp.exp(qg)                                          # (M, T)
    denom = jnp.sum(e, axis=1, keepdims=True)                # (M, 1)
    qw = e / denom                                            # exact divide

    # combined[m] = sum_t softmax_t(wq*q[m,t]) * d_score[m,t]
    combined = jnp.sum(qw * s, axis=1, keepdims=True)         # (M, 1)

    # ---- doc gate + final_layer:  out[m] = combined[m] * sum_j(wd*ds[j]*wf[j]) + bf
    scale = jnp.sum(ds_ref[...] * wf_row, axis=1, keepdims=True)   # (1, 1)
    out_ref[...] = combined * scale + bf                            # (M, 1)


# --------------------------------- wrapper ----------------------------------
def nprf_drmm_forward(dd_q_input, dd_d_input, doc_scores, params):
    wq_gate, w1, b1, w2, b2, wd_gate, wf, bf = params
    B, N, T, _ = dd_q_input.shape
    H = dd_d_input.shape[-1]
    K = w1.shape[1]
    M, TH, TK = N, T * H, T * K
    assert M <= TK, "wd*wf row is packed into the (2, T*K) operand"

    f32 = jnp.float32
    # Free, contiguous reshapes into the lane-major layouts the kernel wants.
    q_mt = dd_q_input.reshape(B, M, T).astype(f32)          # (B, M, T)
    d_mt = dd_d_input.reshape(B, M, TH).astype(f32)         # (B, M, T*H)
    ds = doc_scores.reshape(B, 1, M).astype(f32)            # (B, 1, M)

    # Constant (per call) weight preprocessing: block-diagonal MLP weights so
    # the second matmul's output is already (M, T).
    eye_t = jnp.eye(T, dtype=f32)
    w1b = jnp.kron(eye_t, w1.astype(f32))                    # (T*H, T*K)
    w2b = jnp.kron(eye_t, w2.astype(f32))                    # (T*K, T)
    b1_row = jnp.tile(b1.reshape(1, K).astype(f32), (1, T))  # (1, T*K)
    wf_row = wd_gate.reshape(()).astype(f32) * wf.reshape(1, M).astype(f32)
    wf_pad = jnp.zeros((1, TK), f32).at[:, :M].set(wf_row)
    rows = jnp.concatenate([b1_row, wf_pad], axis=0)         # (2, T*K)

    scal = jnp.stack([wq_gate.reshape(()).astype(f32),
                      b2.reshape(()).astype(f32),
                      bf.reshape(()).astype(f32),
                      jnp.zeros((), f32)]).reshape(1, 4)     # (1, 4) SMEM pack

    cost = pl.CostEstimate(
        flops=B * (2 * M * TH * TK + 2 * M * TK * T + 6 * M * T + 4 * M),
        transcendentals=B * (M * TK + M * T),
        bytes_accessed=4 * (B * (M * TH + M * T + 2 * M)
                            + TH * TK + TK * T + 2 * TK + 4),
    )

    grid_spec = pltpu.PrefetchScalarGridSpec(
        num_scalar_prefetch=0,
        grid=(B,),                                            # one query per step
        in_specs=[
            pl.BlockSpec((None, M, T), lambda b: (b, 0, 0)),   # q        (gridded)
            pl.BlockSpec((None, M, TH), lambda b: (b, 0, 0)),  # d        (gridded)
            pl.BlockSpec((None, 1, M), lambda b: (b, 0, 0)),   # doc sc.  (gridded)
            pl.BlockSpec((TH, TK), lambda b: (0, 0)),          # kron(I, W1), resident
            pl.BlockSpec((2, TK), lambda b: (0, 0)),           # [b1_tiled ; wd*wf]
            pl.BlockSpec((TK, T), lambda b: (0, 0)),           # kron(I, W2), resident
            pl.BlockSpec((1, 4), lambda b: (0, 0),
                         memory_space=pltpu.MemorySpace.SMEM), # scalar pack
        ],
        out_specs=pl.BlockSpec((None, M, 1), lambda b: (b, 0, 0)),
    )

    out = pl.pallas_call(
        _nprf_fused_kernel,
        out_shape=jax.ShapeDtypeStruct((B, M, 1), f32),
        grid_spec=grid_spec,
        compiler_params=pltpu.CompilerParams(
            dimension_semantics=("parallel",)),               # megacore on v7x
        cost_estimate=cost,
    )(q_mt, d_mt, ds, w1b, rows, w2b, scal)

    return out                                                 # (B, N, 1)


# ----------------------- pure-JAX reference (torch semantics) ----------------
def ref_forward(dd_q, dd_d, doc_scores, params):
    # Torch-module semantics applied per batch element (torch's final-layer
    # broadcast is only defined for batch == 1; each element here is scored as
    # an independent query, identical to the module at B == 1).
    wq_gate, w1, b1, w2, b2, wd_gate, wf, bf = params
    q_weights = jax.nn.softmax(dd_q * wq_gate[0, 0], axis=2)            # (B,N,T,1)
    h = jnp.tanh(dd_d @ w1 + b1.reshape(-1))                            # (B,N,T,K)
    d_scores = h @ w2 + b2[0, 0]                                        # (B,N,T,1)
    combined = jnp.sum(q_weights * d_scores, axis=2)                    # (B,N,1)
    doc_weights = doc_scores[..., 0] * wd_gate[0, 0]                    # (B,N)
    scale = jnp.sum(doc_weights * wf.reshape(-1), axis=-1, keepdims=True)   # (B,1)
    return (combined[..., 0] * scale + bf[0, 0])[..., None]             # (B,N,1)


if __name__ == "__main__":
    hist_size, hidden_size, nb_supervised_doc, doc_topk_term = 30, 5, 10, 20
    B = 4   # four independent queries, one grid step each

    key = jax.random.PRNGKey(0)
    ks = jax.random.split(key, 11)

    # parameters (deterministic; distributions mirror the module's _init_weights)
    wq_gate = jax.random.uniform(ks[0], (1, 1), jnp.float32, -0.01, 0.01)
    w1 = jax.random.uniform(ks[1], (hist_size, hidden_size), jnp.float32, -0.1, 0.1)
    b1 = jax.random.uniform(ks[2], (1, hidden_size), jnp.float32,
                            -1.0 / hist_size ** 0.5, 1.0 / hist_size ** 0.5)
    w2 = jax.random.uniform(ks[3], (hidden_size, 1), jnp.float32, -0.1, 0.1)
    b2 = jax.random.uniform(ks[4], (1, 1), jnp.float32,
                            -1.0 / hidden_size ** 0.5, 1.0 / hidden_size ** 0.5)
    wd_gate = jax.random.uniform(ks[5], (1, 1), jnp.float32, -0.01, 0.01)
    wf = jax.random.uniform(ks[6], (nb_supervised_doc, 1), jnp.float32, -0.1, 0.1)
    bf = jax.random.uniform(ks[7], (1, 1), jnp.float32,
                            -1.0 / nb_supervised_doc ** 0.5, 1.0 / nb_supervised_doc ** 0.5)
    params = (wq_gate, w1, b1, w2, b2, wd_gate, wf, bf)

    # inputs
    dd_q_input = jax.random.normal(ks[8], (B, nb_supervised_doc, doc_topk_term, 1), jnp.float32)
    dd_d_input = jax.random.normal(ks[9], (B, nb_supervised_doc, doc_topk_term, hist_size), jnp.float32)
    doc_scores = jax.random.normal(ks[10], (B, nb_supervised_doc, 1), jnp.float32)

    fwd = jax.jit(nprf_drmm_forward)
    out = fwd(dd_q_input, dd_d_input, doc_scores, params)
    out = jax.block_until_ready(out)

    ref = ref_forward(dd_q_input, dd_d_input, doc_scores, params)
    assert out.shape == ref.shape == (B, nb_supervised_doc, 1), (out.shape, ref.shape)
    assert jnp.allclose(out, ref, atol=2e-5, rtol=1e-4), (out, ref)

    print("KERNEL_OK")
</pallas_src>

<mosaic_0001>
module attributes {stable_mosaic.version = 11 : i64} {
  func.func @_nprf_fused_kernel(%arg0: i32, %arg1: memref<1x10x20xf32, #tpu.memory_space<vmem>>, %arg2: memref<1x10x600xf32, #tpu.memory_space<vmem>>, %arg3: memref<1x1x10xf32, #tpu.memory_space<vmem>>, %arg4: memref<600x100xf32, #tpu.memory_space<vmem>>, %arg5: memref<2x100xf32, #tpu.memory_space<vmem>>, %arg6: memref<100x20xf32, #tpu.memory_space<vmem>>, %arg7: memref<1x4xf32, #tpu.memory_space<smem>>, %arg8: memref<1x10x1xf32, #tpu.memory_space<vmem>>) attributes {dimension_semantics = [#tpu.dimension_semantics<parallel>], iteration_bounds = array<i64: 4>, scalar_prefetch = 0 : i64, scratch_operands = 0 : i64, tpu.core_type = #tpu.core_type<tc>, window_params = [{transform_indices = @transform_0, window_bounds = array<i64: 1, 10, 20>}, {transform_indices = @transform_1, window_bounds = array<i64: 1, 10, 600>}, {transform_indices = @transform_2, window_bounds = array<i64: 1, 1, 10>}, {pipeline_mode = #tpu.pipeline_mode<synchronous>, transform_indices = @transform_3, window_bounds = array<i64: 600, 100>}, {pipeline_mode = #tpu.pipeline_mode<synchronous>, transform_indices = @transform_4, window_bounds = array<i64: 2, 100>}, {pipeline_mode = #tpu.pipeline_mode<synchronous>, transform_indices = @transform_5, window_bounds = array<i64: 100, 20>}, {transform_indices = @transform_6, window_bounds = array<i64: 1, 4>}, {transform_indices = @transform_7, window_bounds = array<i64: 1, 10, 1>}]} {
    %c0 = arith.constant 0 : index
    %c0_0 = arith.constant 0 : index
    %0 = memref.load %arg7[%c0, %c0_0] : memref<1x4xf32, #tpu.memory_space<smem>>
    %c0_1 = arith.constant 0 : index
    %c1 = arith.constant 1 : index
    %1 = memref.load %arg7[%c0_1, %c1] : memref<1x4xf32, #tpu.memory_space<smem>>
    %c0_2 = arith.constant 0 : index
    %c2 = arith.constant 2 : index
    %2 = memref.load %arg7[%c0_2, %c2] : memref<1x4xf32, #tpu.memory_space<smem>>
    %c0_3 = arith.constant 0 : index
    %c0_4 = arith.constant 0 : index
    %3 = vector.load %arg5[%c0_3, %c0_4] : memref<2x100xf32, #tpu.memory_space<vmem>>, vector<2x100xf32>
    %4 = vector.extract_strided_slice %3 {offsets = [0, 0], sizes = [1, 100], strides = [1, 1]} : vector<2x100xf32> to vector<1x100xf32>
    %5 = vector.extract_strided_slice %3 {offsets = [1, 0], sizes = [1, 10], strides = [1, 1]} : vector<2x100xf32> to vector<1x10xf32>
    %c0_5 = arith.constant 0 : index
    %c0_6 = arith.constant 0 : index
    %c0_7 = arith.constant 0 : index
    %6 = vector.load %arg2[%c0_5, %c0_6, %c0_7] : memref<1x10x600xf32, #tpu.memory_space<vmem>>, vector<1x10x600xf32>
    %7 = vector.shape_cast %6 : vector<1x10x600xf32> to vector<10x600xf32>
    %c0_8 = arith.constant 0 : index
    %c0_9 = arith.constant 0 : index
    %8 = vector.load %arg4[%c0_8, %c0_9] : memref<600x100xf32, #tpu.memory_space<vmem>>, vector<600x100xf32>
    %cst = arith.constant dense<0.000000e+00> : vector<10x100xf32>
    %9 = tpu.matmul %7, %8, %cst {dimension_numbers = #tpu.dot_dimension_numbers<[1], [0], [0], [1], [0, 0, 1, 1], [], []>} : vector<10x600xf32>, vector<600x100xf32>, vector<10x100xf32> -> vector<10x100xf32>
    %10 = vector.broadcast %4 : vector<1x100xf32> to vector<10x100xf32>
    %11 = arith.addf %9, %10 : vector<10x100xf32>
    %12 = math.tanh %11 : vector<10x100xf32>
    %c0_10 = arith.constant 0 : index
    %c0_11 = arith.constant 0 : index
    %13 = vector.load %arg6[%c0_10, %c0_11] : memref<100x20xf32, #tpu.memory_space<vmem>>, vector<100x20xf32>
    %cst_12 = arith.constant dense<0.000000e+00> : vector<10x20xf32>
    %14 = tpu.matmul %12, %13, %cst_12 {dimension_numbers = #tpu.dot_dimension_numbers<[1], [0], [0], [1], [0, 0, 1, 1], [], []>} : vector<10x100xf32>, vector<100x20xf32>, vector<10x20xf32> -> vector<10x20xf32>
    %15 = vector.broadcast %1 : f32 to vector<10x20xf32>
    %16 = arith.addf %14, %15 : vector<10x20xf32>
    %c0_13 = arith.constant 0 : index
    %c0_14 = arith.constant 0 : index
    %c0_15 = arith.constant 0 : index
    %17 = vector.load %arg1[%c0_13, %c0_14, %c0_15] : memref<1x10x20xf32, #tpu.memory_space<vmem>>, vector<1x10x20xf32>
    %18 = vector.shape_cast %17 : vector<1x10x20xf32> to vector<10x20xf32>
    %19 = vector.broadcast %0 : f32 to vector<10x20xf32>
    %20 = arith.mulf %18, %19 : vector<10x20xf32>
    %cst_16 = arith.constant dense<0xFF800000> : vector<10xf32>
    %21 = vector.multi_reduction <maximumf>, %20, %cst_16 [1] : vector<10x20xf32> to vector<10xf32>
    %22 = vector.shape_cast %21 : vector<10xf32> to vector<10x1xf32>
    %23 = vector.broadcast %22 : vector<10x1xf32> to vector<10x20xf32>
    %24 = arith.subf %20, %23 : vector<10x20xf32>
    %25 = math.exp %24 : vector<10x20xf32>
    %cst_17 = arith.constant dense<0.000000e+00> : vector<10xf32>
    %26 = vector.multi_reduction <add>, %25, %cst_17 [1] : vector<10x20xf32> to vector<10xf32>
    %27 = vector.shape_cast %26 : vector<10xf32> to vector<10x1xf32>
    %28 = vector.broadcast %27 : vector<10x1xf32> to vector<10x20xf32>
    %29 = arith.divf %25, %28 : vector<10x20xf32>
    %30 = arith.mulf %29, %16 : vector<10x20xf32>
    %cst_18 = arith.constant dense<0.000000e+00> : vector<10xf32>
    %31 = vector.multi_reduction <add>, %30, %cst_18 [1] : vector<10x20xf32> to vector<10xf32>
    %32 = vector.shape_cast %31 : vector<10xf32> to vector<10x1xf32>
    %c0_19 = arith.constant 0 : index
    %c0_20 = arith.constant 0 : index
    %c0_21 = arith.constant 0 : index
    %33 = vector.load %arg3[%c0_19, %c0_20, %c0_21] : memref<1x1x10xf32, #tpu.memory_space<vmem>>, vector<1x1x10xf32>
    %34 = vector.shape_cast %33 : vector<1x1x10xf32> to vector<1x10xf32>
    %35 = arith.mulf %34, %5 : vector<1x10xf32>
    %cst_22 = arith.constant dense<0.000000e+00> : vector<1xf32>
    %36 = vector.multi_reduction <add>, %35, %cst_22 [1] : vector<1x10xf32> to vector<1xf32>
    %37 = vector.shape_cast %36 : vector<1xf32> to vector<1x1xf32>
    %38 = vector.broadcast %37 : vector<1x1xf32> to vector<10x1xf32>
    %39 = arith.mulf %32, %38 : vector<10x1xf32>
    %40 = vector.broadcast %2 : f32 to vector<10x1xf32>
    %41 = arith.addf %39, %40 : vector<10x1xf32>
    %c0_23 = arith.constant 0 : index
    %c0_24 = arith.constant 0 : index
    %c0_25 = arith.constant 0 : index
    %42 = vector.load %arg8[%c0_23, %c0_24, %c0_25] : memref<1x10x1xf32, #tpu.memory_space<vmem>>, vector<1x10x1xf32>
    %43 = vector.shape_cast %42 : vector<1x10x1xf32> to vector<10x1xf32>
    %44 = vector.shape_cast %41 : vector<10x1xf32> to vector<1x10x1xf32>
    tpu.vector_store %arg8[%c0_23, %c0_24, %c0_25], %44 {strides = array<i32>} : memref<1x10x1xf32, #tpu.memory_space<vmem>>, vector<1x10x1xf32>,
    return
  }
  func.func @transform_0(%arg0: i32) -> (i32, i32, i32) {
    %c0_i32 = arith.constant 0 : i32
    %c0_i32_0 = arith.constant 0 : i32
    %c0_i32_1 = arith.constant 0 : i32
    return %arg0, %c0_i32, %c0_i32_0 : i32, i32, i32
  }
  func.func @transform_1(%arg0: i32) -> (i32, i32, i32) {
    %c0_i32 = arith.constant 0 : i32
    %c0_i32_0 = arith.constant 0 : i32
    %c0_i32_1 = arith.constant 0 : i32
    return %arg0, %c0_i32, %c0_i32_0 : i32, i32, i32
  }
  func.func @transform_2(%arg0: i32) -> (i32, i32, i32) {
    %c0_i32 = arith.constant 0 : i32
    %c0_i32_0 = arith.constant 0 : i32
    %c0_i32_1 = arith.constant 0 : i32
    return %arg0, %c0_i32, %c0_i32_0 : i32, i32, i32
  }
  func.func @transform_3(%arg0: i32) -> (i32, i32) {
    %c0_i32 = arith.constant 0 : i32
    %c0_i32_0 = arith.constant 0 : i32
    %c0_i32_1 = arith.constant 0 : i32
    return %c0_i32, %c0_i32_0 : i32, i32
  }
  func.func @transform_4(%arg0: i32) -> (i32, i32) {
    %c0_i32 = arith.constant 0 : i32
    %c0_i32_0 = arith.constant 0 : i32
    %c0_i32_1 = arith.constant 0 : i32
    return %c0_i32, %c0_i32_0 : i32, i32
  }
  func.func @transform_5(%arg0: i32) -> (i32, i32) {
    %c0_i32 = arith.constant 0 : i32
    %c0_i32_0 = arith.constant 0 : i32
    %c0_i32_1 = arith.constant 0 : i32
    return %c0_i32, %c0_i32_0 : i32, i32
  }
  func.func @transform_6(%arg0: i32) -> (i32, i32) {
    %c0_i32 = arith.constant 0 : i32
    %c0_i32_0 = arith.constant 0 : i32
    %c0_i32_1 = arith.constant 0 : i32
    return %c0_i32, %c0_i32_0 : i32, i32
  }
  func.func @transform_7(%arg0: i32) -> (i32, i32, i32) {
    %c0_i32 = arith.constant 0 : i32
    %c0_i32_0 = arith.constant 0 : i32
    %c0_i32_1 = arith.constant 0 : i32
    return %arg0, %c0_i32, %c0_i32_0 : i32, i32, i32
  }
}

</mosaic_0001>

<llo_original>
// kernel: nprf_drmm_forward.1
$region0: #{nprf_drmm_forward.1}
  #allocation0 [shape = 'u32[]', space=smem, size = 0x4, offset = 0x4, fixed_abs, tag = 'smem constant byte address 0x4 - core index']
  #allocation1 [shape = 'u32[144,128]{1,0:T(1,128)}', space=vmem, size = 0x12000, scoped, tag = 'internal scratch']
  %s0 = inlined_call_operand.vmem [shape: f32[4,10,20], index: 0, kind: input, shape index: {}]
  %s1 = inlined_call_operand.vmem [shape: f32[4,10,600], index: 1, kind: input, shape index: {}]
  %s2 = inlined_call_operand.vmem [shape: f32[4,1,10], index: 2, kind: input, shape index: {}]
  %s3 = inlined_call_operand.vmem [shape: f32[600,100], index: 3, kind: input, shape index: {}]
  %s4 = inlined_call_operand.vmem [shape: f32[2,100], index: 4, kind: input, shape index: {}]
  %s5 = inlined_call_operand.vmem [shape: f32[100,20], index: 5, kind: input, shape index: {}]
  %s6 = inlined_call_operand.vmem [shape: f32[1,4], index: 6, kind: input, shape index: {}]
  %s7 = inlined_call_operand.vmem [shape: f32[4,10,1], index: 7, kind: output, shape index: {}]
  %s8 = sld [smem:[#allocation0]]
  $region65: #{nprf_drmm_forward.1} parent=0
    _
  %s10 = ssub.s32 1, %s8
  %s11 = scalar_select 0, %s10, %s8
  $region1: #{nprf_drmm_forward.1} parent=0
    #allocation2 [shape = 'u8[512]{0}', space=smem, size = 0x200, scoped, tag = 'input window, operand 6, single buffered']
    #allocation3 [shape = 's32[2]{0}', space=sflag, size = 0x8, scoped, tag = 'scoped memory for nprf_drmm_forward.1']
    %12 = vsyncpa [#allocation3], 0
    loop: start=0, step=1, limit=6
    $region2: #{nprf_drmm_forward.1} parent=1 // loop_pre_header
      _
    $region3: #{nprf_drmm_forward.1} parent=1 // loop_header
      %s14 = sphi 0, %s18
      %p15 = scmp.ge.s32.totalorder %s14, 6
      %s24 = sphi 0, %s26
      %s27 = sphi 0, %s24
      %s28 = sphi 0, %s27
      %s44 = sphi 0, %s28
      %s50 = sphi 0, %s52
      %s53 = sphi 0, %s50
      %s54 = sphi 0, %s53
      %s70 = sphi 0, %s54
      %s76 = sphi 0, %s78
      %s79 = sphi 0, %s76
      %s80 = sphi 0, %s79
      %s96 = sphi 0, %s80
      %s100 = sphi 0, %s100
      %s102 = sphi 0, %s100
      %s103 = sphi 0, %s102
      %s117 = sphi 0, %s103
      %s121 = sphi 0, %s121
      %s123 = sphi 0, %s121
      %s124 = sphi 0, %s123
      %s138 = sphi 0, %s124
      %s142 = sphi 0, %s142
      %s144 = sphi 0, %s142
      %s145 = sphi 0, %s144
      %s159 = sphi 0, %s145
      %s163 = sphi 0, %s163
      %s165 = sphi 0, %s163
      %s166 = sphi 0, %s165
      %s180 = sphi 0, %s166
      %s186 = sphi 0, %s188
      %s189 = sphi 0, %s186
      %s190 = sphi 0, %s189
      %s206 = sphi 0, %s190
    $region4: #{nprf_drmm_forward.1} parent=1 // loop_header_branch
      %17 = sbr.rel (%p15) target = $region8
    $region5: #{nprf_drmm_forward.1} parent=1 // loop_body
      %s19 = ssub.s32 %s14, 1
      %s20 = ssub.s32 %s14, 2
      %s21 = sadd.s32 %s14, 1
      %s22 = ssub.s32 %s14, %s21
      %p23 = scmp.eq.s32.totalorder %s22, 0
      %s25 = sadd.s32 %s24, 1
      %s26 = scalar_select %p23, %s24, %s25
      %p29 = pneg %p23
      %p30 = scmp.eq.s32.totalorder %s14, 3
      %p31 = por %p29, %p30
      %p32 = scmp.ne.s32.totalorder %s24, %s27
      %p33 = scmp.eq.s32.totalorder %s14, 0
      %p34 = por %p32, %p33
      %p35 = scmp.ne.s32.totalorder %s24, %s27
      %p36 = scmp.eq.s32.totalorder %s19, 3
      %p37 = por %p35, %p36
      %p38 = scmp.ne.s32.totalorder %s27, %s28
      %p39 = scmp.eq.s32.totalorder %s19, 0
      %p40 = por %p38, %p39
      %p41 = scmp.ne.s32.totalorder %s27, %s28
      %p42 = scmp.eq.s32.totalorder %s20, 3
      %p43 = por %p41, %p42
      %p45 = scmp.ne.s32.totalorder %s28, %s44
      %p46 = scmp.eq.s32.totalorder %s20, 0
      %p47 = por %p45, %p46
      %s48 = ssub.s32 %s14, %s21
      %p49 = scmp.eq.s32.totalorder %s48, 0
      %s51 = sadd.s32 %s50, 1
      %s52 = scalar_select %p49, %s50, %s51
      %p55 = pneg %p49
      %p56 = scmp.eq.s32.totalorder %s14, 3
      %p57 = por %p55, %p56
      %p58 = scmp.ne.s32.totalorder %s50, %s53
      %p59 = scmp.eq.s32.totalorder %s14, 0
      %p60 = por %p58, %p59
      %p61 = scmp.ne.s32.totalorder %s50, %s53
      %p62 = scmp.eq.s32.totalorder %s19, 3
      %p63 = por %p61, %p62
      %p64 = scmp.ne.s32.totalorder %s53, %s54
      %p65 = scmp.eq.s32.totalorder %s19, 0
      %p66 = por %p64, %p65
      %p67 = scmp.ne.s32.totalorder %s53, %s54
      %p68 = scmp.eq.s32.totalorder %s20, 3
      %p69 = por %p67, %p68
      %p71 = scmp.ne.s32.totalorder %s54, %s70
      %p72 = scmp.eq.s32.totalorder %s20, 0
      %p73 = por %p71, %p72
      %s74 = ssub.s32 %s14, %s21
      %p75 = scmp.eq.s32.totalorder %s74, 0
      %s77 = sadd.s32 %s76, 1
      %s78 = scalar_select %p75, %s76, %s77
      %p81 = pneg %p75
      %p82 = scmp.eq.s32.totalorder %s14, 3
      %p83 = por %p81, %p82
      %p84 = scmp.ne.s32.totalorder %s76, %s79
      %p85 = scmp.eq.s32.totalorder %s14, 0
      %p86 = por %p84, %p85
      %p87 = scmp.ne.s32.totalorder %s76, %s79
      %p88 = scmp.eq.s32.totalorder %s19, 3
      %p89 = por %p87, %p88
      %p90 = scmp.ne.s32.totalorder %s79, %s80
      %p91 = scmp.eq.s32.totalorder %s19, 0
      %p92 = por %p90, %p91
      %p93 = scmp.ne.s32.totalorder %s79, %s80
      %p94 = scmp.eq.s32.totalorder %s20, 3
      %p95 = por %p93, %p94
      %p97 = scmp.ne.s32.totalorder %s80, %s96
      %p98 = scmp.eq.s32.totalorder %s20, 0
      %p99 = por %p97, %p98
      %s101 = sadd.s32 %s100, 1
      %p104 = scmp.eq.s32.totalorder %s14, 3
      %p105 = scmp.ne.s32.totalorder %s100, %s102
      %p106 = scmp.eq.s32.totalorder %s14, 0
      %p107 = por %p105, %p106
      %p108 = scmp.ne.s32.totalorder %s100, %s102
      %p109 = scmp.eq.s32.totalorder %s19, 3
      %p110 = por %p108, %p109
      %p111 = scmp.ne.s32.totalorder %s102, %s103
      %p112 = scmp.eq.s32.totalorder %s19, 0
      %p113 = por %p111, %p112
      %p114 = scmp.ne.s32.totalorder %s102, %s103
      %p115 = scmp.eq.s32.totalorder %s20, 3
      %p116 = por %p114, %p115
      %p118 = scmp.ne.s32.totalorder %s103, %s117
      %p119 = scmp.eq.s32.totalorder %s20, 0
      %p120 = por %p118, %p119
      %s122 = sadd.s32 %s121, 1
      %p125 = scmp.eq.s32.totalorder %s14, 3
      %p126 = scmp.ne.s32.totalorder %s121, %s123
      %p127 = scmp.eq.s32.totalorder %s14, 0
      %p128 = por %p126, %p127
      %p129 = scmp.ne.s32.totalorder %s121, %s123
      %p130 = scmp.eq.s32.totalorder %s19, 3
      %p131 = por %p129, %p130
      %p132 = scmp.ne.s32.totalorder %s123, %s124
      %p133 = scmp.eq.s32.totalorder %s19, 0
      %p134 = por %p132, %p133
      %p135 = scmp.ne.s32.totalorder %s123, %s124
      %p136 = scmp.eq.s32.totalorder %s20, 3
      %p137 = por %p135, %p136
      %p139 = scmp.ne.s32.totalorder %s124, %s138
      %p140 = scmp.eq.s32.totalorder %s20, 0
      %p141 = por %p139, %p140
      %s143 = sadd.s32 %s142, 1
      %p146 = scmp.eq.s32.totalorder %s14, 3
      %p147 = scmp.ne.s32.totalorder %s142, %s144
      %p148 = scmp.eq.s32.totalorder %s14, 0
      %p149 = por %p147, %p148
      %p150 = scmp.ne.s32.totalorder %s142, %s144
      %p151 = scmp.eq.s32.totalorder %s19, 3
      %p152 = por %p150, %p151
      %p153 = scmp.ne.s32.totalorder %s144, %s145
      %p154 = scmp.eq.s32.totalorder %s19, 0
      %p155 = por %p153, %p154
      %p156 = scmp.ne.s32.totalorder %s144, %s145
      %p157 = scmp.eq.s32.totalorder %s20, 3
      %p158 = por %p156, %p157
      %p160 = scmp.ne.s32.totalorder %s145, %s159
      %p161 = scmp.eq.s32.totalorder %s20, 0
      %p162 = por %p160, %p161
      %s164 = sadd.s32 %s163, 1
      %p167 = scmp.eq.s32.totalorder %s14, 3
      %p168 = scmp.ne.s32.totalorder %s163, %s165
      %p169 = scmp.eq.s32.totalorder %s14, 0
      %p170 = por %p168, %p169
      %p171 = scmp.ne.s32.totalorder %s163, %s165
      %p172 = scmp.eq.s32.totalorder %s19, 3
      %p173 = por %p171, %p172
      %p174 = scmp.ne.s32.totalorder %s165, %s166
      %p175 = scmp.eq.s32.totalorder %s19, 0
      %p176 = por %p174, %p175
      %p177 = scmp.ne.s32.totalorder %s165, %s166
      %p178 = scmp.eq.s32.totalorder %s20, 3
      %p179 = por %p177, %p178
      %p181 = scmp.ne.s32.totalorder %s166, %s180
      %p182 = scmp.eq.s32.totalorder %s20, 0
      %p183 = por %p181, %p182
      %s184 = ssub.s32 %s14, %s21
      %p185 = scmp.eq.s32.totalorder %s184, 0
      %s187 = sadd.s32 %s186, 1
      %s188 = scalar_select %p185, %s186, %s187
      %p191 = pneg %p185
      %p192 = scmp.eq.s32.totalorder %s14, 3
      %p193 = por %p191, %p192
      %p194 = scmp.ne.s32.totalorder %s186, %s189
      %p195 = scmp.eq.s32.totalorder %s14, 0
      %p196 = por %p194, %p195
      %p197 = scmp.ne.s32.totalorder %s186, %s189
      %p198 = scmp.eq.s32.totalorder %s19, 3
      %p199 = por %p197, %p198
      %p200 = scmp.ne.s32.totalorder %s189, %s190
      %p201 = scmp.eq.s32.totalorder %s19, 0
      %p202 = por %p200, %p201
      %p203 = scmp.ne.s32.totalorder %s189, %s190
      %p204 = scmp.eq.s32.totalorder %s20, 3
      %p205 = por %p203, %p204
      %p207 = scmp.ne.s32.totalorder %s190, %s206
      %p208 = scmp.eq.s32.totalorder %s20, 0
      %p209 = por %p207, %p208
      %p210 = scmp.le.s32.totalorder 1, %s14
      %p211 = scmp.lt.s32.totalorder %s14, 5
      %p212 = pnand %p210, %p211
      %p213 = pneg %p212
      // Predicated region
      $region9: #{nprf_drmm_forward.1} parent=5 // pred_check
        _
      $region10: #{nprf_drmm_forward.1} parent=5 // pred_check_branch
        %215 = sbr.rel (%p212) target = $region12
      $region11: #{nprf_drmm_forward.1} parent=5 // pred_region
        %s216 = ssub.s32 %s14, 1
        // Predicated region
        $region13: #{nprf_drmm_forward.1} parent=11 // pred_check
          %p217 = pneg %p113
        $region14: #{nprf_drmm_forward.1} parent=11 // pred_check_branch
          %219 = sbr.rel (%p217) target = $region16
        $region15: #{nprf_drmm_forward.1} parent=11 // pred_region
          _
        $region16: #{nprf_drmm_forward.1} parent=11 // pred_fallthru
          _
        // Predicated region
        $region17: #{nprf_drmm_forward.1} parent=11 // pred_check
          %p220 = pneg %p134
        $region18: #{nprf_drmm_forward.1} parent=11 // pred_check_branch
          %222 = sbr.rel (%p220) target = $region20
        $region19: #{nprf_drmm_forward.1} parent=11 // pred_region
          _
        $region20: #{nprf_drmm_forward.1} parent=11 // pred_fallthru
          _
        // Predicated region
        $region21: #{nprf_drmm_forward.1} parent=11 // pred_check
          %p223 = pneg %p155
        $region22: #{nprf_drmm_forward.1} parent=11 // pred_check_branch
          %225 = sbr.rel (%p223) target = $region24
        $region23: #{nprf_drmm_forward.1} parent=11 // pred_region
          _
        $region24: #{nprf_drmm_forward.1} parent=11 // pred_fallthru
          _
        // Predicated region
        $region25: #{nprf_drmm_forward.1} parent=11 // pred_check
          %p226 = pneg %p176
        $region26: #{nprf_drmm_forward.1} parent=11 // pred_check_branch
          %228 = sbr.rel (%p226) target = $region28
        $region27: #{nprf_drmm_forward.1} parent=11 // pred_region
          %s230 = ssub.s32 16, 16
          %231 = vsyncadd [#allocation3], %s230
          %s233 = sshll.u32 %s6, 4
          %s234 = int_to_ptr.vmem [resolvable:$true] %s233
          %236 = dma.vmem_to_smem %s234, 16, [#allocation2], [#allocation3]
        $region28: #{nprf_drmm_forward.1} parent=11 // pred_fallthru
          _
      $region12: #{nprf_drmm_forward.1} parent=5 // pred_fallthru
        _
      %p237 = scmp.lt.s32.totalorder %s14, 4
      // Predicated region
      $region29: #{nprf_drmm_forward.1} parent=5 // pred_check
        %p238 = pneg %p237
      $region30: #{nprf_drmm_forward.1} parent=5 // pred_check_branch
        %240 = sbr.rel (%p238) target = $region32
      $region31: #{nprf_drmm_forward.1} parent=5 // pred_region
        // Predicated region
        $region33: #{nprf_drmm_forward.1} parent=31 // pred_check
          %p241 = pneg %p34
        $region34: #{nprf_drmm_forward.1} parent=31 // pred_check_branch
          %243 = sbr.rel (%p241) target = $region36
        $region35: #{nprf_drmm_forward.1} parent=31 // pred_region
          %p244 = scmp.lt.s32.totalorder %s14, 3
          %s245 = scalar_select %p244, %s14, 3
          %s246 = smul.addr %s245, 2
          %s247 = smul.addr %s246, 8
          %s248 = scalar_lea.vmem %s0, %s247
        $region36: #{nprf_drmm_forward.1} parent=31 // pred_fallthru
          _
        // Predicated region
        $region37: #{nprf_drmm_forward.1} parent=31 // pred_check
          %p249 = pneg %p60
        $region38: #{nprf_drmm_forward.1} parent=31 // pred_check_branch
          %251 = sbr.rel (%p249) target = $region40
        $region39: #{nprf_drmm_forward.1} parent=31 // pred_region
          %p252 = scmp.lt.s32.totalorder %s14, 3
          %s253 = scalar_select %p252, %s14, 3
          %s254 = smul.addr %s253, 10
          %s255 = smul.addr %s254, 8
          %s256 = scalar_lea.vmem %s1, %s255
        $region40: #{nprf_drmm_forward.1} parent=31 // pred_fallthru
          _
        // Predicated region
        $region41: #{nprf_drmm_forward.1} parent=31 // pred_check
          %p257 = pneg %p86
        $region42: #{nprf_drmm_forward.1} parent=31 // pred_check_branch
          %259 = sbr.rel (%p257) target = $region44
        $region43: #{nprf_drmm_forward.1} parent=31 // pred_region
          %p260 = scmp.lt.s32.totalorder %s14, 3
          %s261 = scalar_select %p260, %s14, 3
          %s262 = scalar_lea.vmem %s2, %s261
        $region44: #{nprf_drmm_forward.1} parent=31 // pred_fallthru
          _
      $region32: #{nprf_drmm_forward.1} parent=5 // pred_fallthru
        _
      %p263 = scmp.le.s32.totalorder 1, %s14
      %p264 = scmp.lt.s32.totalorder %s14, 5
      %p265 = pnand %p263, %p264
      %p266 = pneg %p265
      // Predicated region
      $region45: #{nprf_drmm_forward.1} parent=5 // pred_check
        _
      $region46: #{nprf_drmm_forward.1} parent=5 // pred_check_branch
        %268 = sbr.rel (%p265) target = $region48
      $region47: #{nprf_drmm_forward.1} parent=5 // pred_region
        %s269 = ssub.s32 %s14, 1
        // Predicated region
        $region49: #{nprf_drmm_forward.1} parent=47 // pred_check
          %p270 = pneg %p176
        $region50: #{nprf_drmm_forward.1} parent=47 // pred_check_branch
          %272 = sbr.rel (%p270) target = $region52
        $region51: #{nprf_drmm_forward.1} parent=47 // pred_region
          %273 = dma.done [#allocation3], 16
        $region52: #{nprf_drmm_forward.1} parent=47 // pred_fallthru
          _
        %274 = sfence
        %p275 = scmp.lt.s32.totalorder %s19, 3
        %s276 = scalar_select %p275, %s19, 3
        %s277 = smul.addr %s276, 2
        %s278 = smul.addr %s277, 8
        %s279 = scalar_lea.vmem %s0, %s278
        %p280 = pneg %p40
        %p281 = pneg %p37
        %p282 = scmp.lt.s32.totalorder %s19, 3
        %s283 = scalar_select %p282, %s19, 3
        %s284 = smul.addr %s283, 10
        %s285 = smul.addr %s284, 8
        %s286 = scalar_lea.vmem %s1, %s285
        %p287 = pneg %p66
        %p288 = pneg %p63
        %p289 = scmp.lt.s32.totalorder %s19, 3
        %s290 = scalar_select %p289, %s19, 3
        %s291 = scalar_lea.vmem %s2, %s290
        %p292 = pneg %p92
        %p293 = pneg %p89
        %p294 = pneg %p113
        %p295 = pneg %p110
        %p296 = pneg %p134
        %p297 = pneg %p131
        %p298 = pneg %p155
        %p299 = pneg %p152
        %p300 = pneg %p176
        %p301 = pneg %p173
        %p302 = pneg %p202
        %p303 = pneg %p199
        %p304 = scmp.lt.s32.totalorder %s19, 3
        %s305 = scalar_select %p304, %s19, 3
        %s306 = smul.addr %s305, 2
        %s307 = smul.addr %s306, 8
        %s308 = scalar_lea.vmem %s7, %s307
        %p309 = scmp.lt.s32.totalorder %s19, 3
        %s310 = scalar_select %p309, %s19, 3
        %s311 = smul.addr %s310, 2
        %s312 = smul.addr %s311, 8
        %s313 = scalar_lea.vmem %s0, %s312
        %p314 = scmp.lt.s32.totalorder %s19, 3
        %s315 = scalar_select %p314, %s19, 3
        %s316 = smul.addr %s315, 10
        %s317 = smul.addr %s316, 8
        %s318 = scalar_lea.vmem %s1, %s317
        %p319 = scmp.lt.s32.totalorder %s19, 3
        %s320 = scalar_select %p319, %s19, 3
        %s321 = scalar_lea.vmem %s2, %s320
        %p322 = scmp.lt.s32.totalorder %s19, 3
        %s323 = scalar_select %p322, %s19, 3
        %s324 = smul.addr %s323, 2
        %s325 = smul.addr %s324, 8
        %s326 = scalar_lea.vmem %s7, %s325
        %s327 = sld [smem:[#allocation2]]
        %s328 = sld [smem:[#allocation2 + $0x1]]
        %s329 = sld [smem:[#allocation2 + $0x2]]
        %v330 = vld [vmem:[%s4] sm:$0x3]
        %v331 = vld [vmem:[%s318] sm:$0xff]
        %v332 = vld [vmem:[%s318 + $0x8] sm:$0xff]
        %v333 = vld [vmem:[%s318 + $0x10] sm:$0xff]
        %v334 = vld [vmem:[%s318 + $0x18] sm:$0xff]
        %v335 = vld [vmem:[%s318 + $0x20] sm:$0xff]
        %v336 = vld [vmem:[%s318 + $0x28] sm:$0x3]
        %v337 = vld [vmem:[%s318 + $0x30] sm:$0x3]
        %v338 = vld [vmem:[%s318 + $0x38] sm:$0x3]
        %v339 = vld [vmem:[%s318 + $0x40] sm:$0x3]
        %v340 = vld [vmem:[%s318 + $0x48] sm:$0x3]
        %v341 = vld [vmem:[%s3] sm:$0xff]
        %v342 = vld [vmem:[%s3 + $0x8] sm:$0xff]
        %v343 = vld [vmem:[%s3 + $0x10] sm:$0xff]
        %v344 = vld [vmem:[%s3 + $0x18] sm:$0xff]
        %v345 = vld [vmem:[%s3 + $0x20] sm:$0xff]
        %v346 = vld [vmem:[%s3 + $0x28] sm:$0xff]
        %v347 = vld [vmem:[%s3 + $0x30] sm:$0xff]
        %v348 = vld [vmem:[%s3 + $0x38] sm:$0xff]
        %v349 = vld [vmem:[%s3 + $0x40] sm:$0xff]
        %v350 = vld [vmem:[%s3 + $0x48] sm:$0xff]
        %v351 = vld [vmem:[%s3 + $0x50] sm:$0xff]
        %v352 = vld [vmem:[%s3 + $0x58] sm:$0xff]
        %v353 = vld [vmem:[%s3 + $0x60] sm:$0xff]
        %v354 = vld [vmem:[%s3 + $0x68] sm:$0xff]
        %v355 = vld [vmem:[%s3 + $0x70] sm:$0xff]
        %v356 = vld [vmem:[%s3 + $0x78] sm:$0xff]
        %v357 = vld [vmem:[%s3 + $0x80] sm:$0xff]
        %v358 = vld [vmem:[%s3 + $0x88] sm:$0xff]
        %v359 = vld [vmem:[%s3 + $0x90] sm:$0xff]
        %v360 = vld [vmem:[%s3 + $0x98] sm:$0xff]
        %v361 = vld [vmem:[%s3 + $0xa0] sm:$0xff]
        %v362 = vld [vmem:[%s3 + $0xa8] sm:$0xff]
        %v363 = vld [vmem:[%s3 + $0xb0] sm:$0xff]
        %v364 = vld [vmem:[%s3 + $0xb8] sm:$0xff]
        %v365 = vld [vmem:[%s3 + $0xc0] sm:$0xff]
        %v366 = vld [vmem:[%s3 + $0xc8] sm:$0xff]
        %v367 = vld [vmem:[%s3 + $0xd0] sm:$0xff]
        %v368 = vld [vmem:[%s3 + $0xd8] sm:$0xff]
        %v369 = vld [vmem:[%s3 + $0xe0] sm:$0xff]
        %v370 = vld [vmem:[%s3 + $0xe8] sm:$0xff]
        %v371 = vld [vmem:[%s3 + $0xf0] sm:$0xff]
        %v372 = vld [vmem:[%s3 + $0xf8] sm:$0xff]
        %v373 = vld [vmem:[%s3 + $0x100] sm:$0xff]
        %v374 = vld [vmem:[%s3 + $0x108] sm:$0xff]
        %v375 = vld [vmem:[%s3 + $0x110] sm:$0xff]
        %v376 = vld [vmem:[%s3 + $0x118] sm:$0xff]
        %v377 = vld [vmem:[%s3 + $0x120] sm:$0xff]
        %v378 = vld [vmem:[%s3 + $0x128] sm:$0xff]
        %v379 = vld [vmem:[%s3 + $0x130] sm:$0xff]
        %v380 = vld [vmem:[%s3 + $0x138] sm:$0xff]
        %v381 = vld [vmem:[%s3 + $0x140] sm:$0xff]
        %v382 = vld [vmem:[%s3 + $0x148] sm:$0xff]
        %v383 = vld [vmem:[%s3 + $0x150] sm:$0xff]
        %v384 = vld [vmem:[%s3 + $0x158] sm:$0xff]
        %v385 = vld [vmem:[%s3 + $0x160] sm:$0xff]
        %v386 = vld [vmem:[%s3 + $0x168] sm:$0xff]
        %v387 = vld [vmem:[%s3 + $0x170] sm:$0xff]
        %v388 = vld [vmem:[%s3 + $0x178] sm:$0xff]
        %v389 = vld [vmem:[%s3 + $0x180] sm:$0xff]
        %v390 = vld [vmem:[%s3 + $0x188] sm:$0xff]
        %v391 = vld [vmem:[%s3 + $0x190] sm:$0xff]
        %v392 = vld [vmem:[%s3 + $0x198] sm:$0xff]
        %v393 = vld [vmem:[%s3 + $0x1a0] sm:$0xff]
        %v394 = vld [vmem:[%s3 + $0x1a8] sm:$0xff]
        %v395 = vld [vmem:[%s3 + $0x1b0] sm:$0xff]
        %v396 = vld [vmem:[%s3 + $0x1b8] sm:$0xff]
        %v397 = vld [vmem:[%s3 + $0x1c0] sm:$0xff]
        %v398 = vld [vmem:[%s3 + $0x1c8] sm:$0xff]
        %v399 = vld [vmem:[%s3 + $0x1d0] sm:$0xff]
        %v400 = vld [vmem:[%s3 + $0x1d8] sm:$0xff]
        %v401 = vld [vmem:[%s3 + $0x1e0] sm:$0xff]
        %v402 = vld [vmem:[%s3 + $0x1e8] sm:$0xff]
        %v403 = vld [vmem:[%s3 + $0x1f0] sm:$0xff]
        %v404 = vld [vmem:[%s3 + $0x1f8] sm:$0xff]
        %v405 = vld [vmem:[%s3 + $0x200] sm:$0xff]
        %v406 = vld [vmem:[%s3 + $0x208] sm:$0xff]
        %v407 = vld [vmem:[%s3 + $0x210] sm:$0xff]
        %v408 = vld [vmem:[%s3 + $0x218] sm:$0xff]
        %v409 = vld [vmem:[%s3 + $0x220] sm:$0xff]
        %v410 = vld [vmem:[%s3 + $0x228] sm:$0xff]
        %v411 = vld [vmem:[%s3 + $0x230] sm:$0xff]
        %v412 = vld [vmem:[%s3 + $0x238] sm:$0xff]
        %v413 = vld [vmem:[%s3 + $0x240] sm:$0xff]
        %v414 = vld [vmem:[%s3 + $0x248] sm:$0xff]
        %v415 = vld [vmem:[%s3 + $0x250] sm:$0xff]
        %v416 = vlaneseq
        %v417 = vshrl.u32 %v416, 7
        %v418 = vsub.s32 0, %v417
        %v419 = vrot.slane %v330, %v418
        %vm420 = vcmask 719872
        %v422 = vsel %vm420, %v335, 0
        %v425 = vsel %vm420, %v340, 0
        %427 = vmatprep.subr.mxu0 0.0
        %428 = vmatpush1.msra.mxu0 %v341
        %429 = vmatprep.subr.mxu0 0.0
        %430 = vmatpush1.msra.mxu0 %v342
        %431 = vmatprep.subr.mxu0 0.0
        %432 = vmatpush1.msra.mxu0 %v343
        %433 = vmatprep.subr.mxu0 0.0
        %434 = vmatpush1.msra.mxu0 %v344
        %435 = vmatprep.subr.mxu0 0.0
        %436 = vmatpush1.msra.mxu0 %v345
        %437 = vmatprep.subr.mxu0 0.0
        %438 = vmatpush1.msra.mxu0 %v346
        %439 = vmatprep.subr.mxu0 0.0
        %440 = vmatpush1.msra.mxu0 %v347
        %441 = vmatprep.subr.mxu0 0.0
        %442 = vmatpush1.msra.mxu0 %v348
        %443 = vmatprep.subr.mxu0 0.0
        %444 = vmatpush1.msra.mxu0 %v349
        %445 = vmatprep.subr.mxu0 0.0
        %446 = vmatpush1.msra.mxu0 %v350
        %447 = vmatprep.subr.mxu0 0.0
        %448 = vmatpush1.msra.mxu0 %v351
        %449 = vmatprep.subr.mxu0 0.0
        %450 = vmatpush1.msra.mxu0 %v352
        %451 = vmatprep.subr.mxu0 0.0
        %452 = vmatpush1.msra.mxu0 %v353
        %453 = vmatprep.subr.mxu0 0.0
        %454 = vmatpush1.msra.mxu0 %v354
        %455 = vmatprep.subr.mxu0 0.0
        %456 = vmatpush1.msra.mxu0 %v355
        %457 = vmatprep.subr.mxu0 0.0
        %458 = vmatpush1.msra.mxu0 %v356
        %459 = vmatprep.subr.mxu0 0.0
        %460 = vmatpush1.msra.mxu0 %v357
        %461 = vmatprep.subr.mxu0 0.0
        %462 = vmatpush1.msra.mxu0 %v358
        %463 = vmatprep.subr.mxu0 0.0
        %464 = vmatpush1.msra.mxu0 %v359
        %465 = vmatprep.subr.mxu0 0.0
        %466 = vmatpush1.msra.mxu0 %v360
        %467 = vmatprep.subr.mxu0 0.0
        %468 = vmatpush1.msra.mxu0 %v361
        %469 = vmatprep.subr.mxu0 0.0
        %470 = vmatpush1.msra.mxu0 %v362
        %471 = vmatprep.subr.mxu0 0.0
        %472 = vmatpush1.msra.mxu0 %v363
        %473 = vmatprep.subr.mxu0 0.0
        %474 = vmatpush1.msra.mxu0 %v364
        %475 = vmatprep.subr.mxu0 0.0
        %476 = vmatpush1.msra.mxu0 %v365
        %477 = vmatprep.subr.mxu0 0.0
        %478 = vmatpush1.msra.mxu0 %v366
        %479 = vmatprep.subr.mxu0 0.0
        %480 = vmatpush1.msra.mxu0 %v367
        %481 = vmatprep.subr.mxu0 0.0
        %482 = vmatpush1.msra.mxu0 %v368
        %483 = vmatprep.subr.mxu0 0.0
        %484 = vmatpush1.msra.mxu0 %v369
        %485 = vmatprep.subr.mxu0 0.0
        %486 = vmatpush1.msra.mxu0 %v370
        %487 = vmatprep.subr.mxu0 0.0
        %488 = vmatpush1.msra.mxu0 %v371
        %489 = vmatprep.subr.mxu0 0.0
        %490 = vmatpush1.msra.mxu0 %v372
        %491 = vmatprep.mubr.f32.mxu0 %v332
        %492 = vmatmul.mubr.f32.gmra.mrb[0].mxu0 %v331
        %v493 = vpop.f32.mrb[0].mxu0
        %v494 = vadd.f32 %v419, %v493
        %v495 = vpop.f32.mrb[0].mxu0
        %496 = vmatprep.mubr.f32.mxu0 %v337
        %497 = vmatmul.mubr.f32.gmra.mrb[0].mxu0 %v336
        %v498 = vpop.f32.mrb[0].mxu0
        %v499 = vadd.f32 %v419, %v498
        %v500 = vpop.f32.mrb[0].mxu0
        %501 = vdwg.mxu0
        %502 = vmatprep.subr.mxu0 0.0
        %503 = vmatpush1.msra.mxu0 %v373
        %504 = vmatprep.subr.mxu0 0.0
        %505 = vmatpush1.msra.mxu0 %v374
        %506 = vmatprep.subr.mxu0 0.0
        %507 = vmatpush1.msra.mxu0 %v375
        %508 = vmatprep.subr.mxu0 0.0
        %509 = vmatpush1.msra.mxu0 %v376
        %510 = vmatprep.subr.mxu0 0.0
        %511 = vmatpush1.msra.mxu0 %v377
        %512 = vmatprep.subr.mxu0 0.0
        %513 = vmatpush1.msra.mxu0 %v378
        %514 = vmatprep.subr.mxu0 0.0
        %515 = vmatpush1.msra.mxu0 %v379
        %516 = vmatprep.subr.mxu0 0.0
        %517 = vmatpush1.msra.mxu0 %v380
        %518 = vmatprep.subr.mxu0 0.0
        %519 = vmatpush1.msra.mxu0 %v381
        %520 = vmatprep.subr.mxu0 0.0
        %521 = vmatpush1.msra.mxu0 %v382
        %522 = vmatprep.subr.mxu0 0.0
        %523 = vmatpush1.msra.mxu0 %v383
        %524 = vmatprep.subr.mxu0 0.0
        %525 = vmatpush1.msra.mxu0 %v384
        %526 = vmatprep.subr.mxu0 0.0
        %527 = vmatpush1.msra.mxu0 %v385
        %528 = vmatprep.subr.mxu0 0.0
        %529 = vmatpush1.msra.mxu0 %v386
        %530 = vmatprep.subr.mxu0 0.0
        %531 = vmatpush1.msra.mxu0 %v387
        %532 = vmatprep.subr.mxu0 0.0
        %533 = vmatpush1.msra.mxu0 %v388
        %534 = vmatprep.subr.mxu0 0.0
        %535 = vmatpush1.msra.mxu0 %v389
        %536 = vmatprep.subr.mxu0 0.0
        %537 = vmatpush1.msra.mxu0 %v390
        %538 = vmatprep.subr.mxu0 0.0
        %539 = vmatpush1.msra.mxu0 %v391
        %540 = vmatprep.subr.mxu0 0.0
        %541 = vmatpush1.msra.mxu0 %v392
        %542 = vmatprep.subr.mxu0 0.0
        %543 = vmatpush1.msra.mxu0 %v393
        %544 = vmatprep.subr.mxu0 0.0
        %545 = vmatpush1.msra.mxu0 %v394
        %546 = vmatprep.subr.mxu0 0.0
        %547 = vmatpush1.msra.mxu0 %v395
        %548 = vmatprep.subr.mxu0 0.0
        %549 = vmatpush1.msra.mxu0 %v396
        %550 = vmatprep.subr.mxu0 0.0
        %551 = vmatpush1.msra.mxu0 %v397
        %552 = vmatprep.subr.mxu0 0.0
        %553 = vmatpush1.msra.mxu0 %v398
        %554 = vmatprep.subr.mxu0 0.0
        %555 = vmatpush1.msra.mxu0 %v399
        %556 = vmatprep.subr.mxu0 0.0
        %557 = vmatpush1.msra.mxu0 %v400
        %558 = vmatprep.subr.mxu0 0.0
        %559 = vmatpush1.msra.mxu0 %v401
        %560 = vmatprep.subr.mxu0 0.0
        %561 = vmatpush1.msra.mxu0 %v402
        %562 = vmatprep.subr.mxu0 0.0
        %563 = vmatpush1.msra.mxu0 %v403
        %564 = vmatprep.subr.mxu0 0.0
        %565 = vmatpush1.msra.mxu0 %v404
        %566 = vmatprep.mubr.f32.mxu0 %v334
        %567 = vmatmul.mubr.f32.gmra.mrb[0].mxu0 %v333
        %v568 = vpop.f32.mrb[0].mxu0
        %v569 = vadd.f32 %v494, %v568
        %v570 = vpop.f32.mrb[0].mxu0
        %571 = vmatprep.mubr.f32.mxu0 %v339
        %572 = vmatmul.mubr.f32.gmra.mrb[0].mxu0 %v338
        %v573 = vpop.f32.mrb[0].mxu0
        %v574 = vadd.f32 %v499, %v573
        %v575 = vpop.f32.mrb[0].mxu0
        %576 = vdwg.mxu0
        %577 = vmatprep.subr.mxu0 0.0
        %578 = vmatpush1.msra.mxu0 %v405
        %579 = vmatprep.subr.mxu0 0.0
        %580 = vmatpush1.msra.mxu0 %v406
        %581 = vmatprep.subr.mxu0 0.0
        %582 = vmatpush1.msra.mxu0 %v407
        %583 = vmatprep.subr.mxu0 0.0
        %584 = vmatpush1.msra.mxu0 %v408
        %585 = vmatprep.subr.mxu0 0.0
        %586 = vmatpush1.msra.mxu0 %v409
        %587 = vmatprep.subr.mxu0 0.0
        %588 = vmatpush1.msra.mxu0 %v410
        %589 = vmatprep.subr.mxu0 0.0
        %590 = vmatpush1.msra.mxu0 %v411
        %591 = vmatprep.subr.mxu0 0.0
        %592 = vmatpush1.msra.mxu0 %v412
        %593 = vmatprep.subr.mxu0 0.0
        %594 = vmatpush1.msra.mxu0 %v413
        %595 = vmatprep.subr.mxu0 0.0
        %596 = vmatpush1.msra.mxu0 %v414
        %597 = vmatprep.subr.mxu0 0.0
        %598 = vmatpush1.msra.mxu0 %v415
        %599 = vmatprep.subr.mxu0 0.0
        %600 = vmatpush1.msra.mxu0 0.0
        %601 = vmatprep.subr.mxu0 0.0
        %602 = vmatpush1.msra.mxu0 0.0
        %603 = vmatprep.subr.mxu0 0.0
        %604 = vmatpush1.msra.mxu0 0.0
        %605 = vmatprep.subr.mxu0 0.0
        %606 = vmatpush1.msra.mxu0 0.0
        %607 = vmatprep.subr.mxu0 0.0
        %608 = vmatpush1.msra.mxu0 0.0
        %609 = vmatprep.subr.mxu0 0.0
        %610 = vmatpush1.msra.mxu0 0.0
        %611 = vmatprep.subr.mxu0 0.0
        %612 = vmatpush1.msra.mxu0 0.0
        %613 = vmatprep.subr.mxu0 0.0
        %614 = vmatpush1.msra.mxu0 0.0
        %615 = vmatprep.subr.mxu0 0.0
        %616 = vmatpush1.msra.mxu0 0.0
        %617 = vmatprep.subr.mxu0 0.0
        %618 = vmatpush1.msra.mxu0 0.0
        %619 = vmatprep.subr.mxu0 0.0
        %620 = vmatpush1.msra.mxu0 0.0
        %621 = vmatprep.subr.mxu0 0.0
        %622 = vmatpush1.msra.mxu0 0.0
        %623 = vmatprep.subr.mxu0 0.0
        %624 = vmatpush1.msra.mxu0 0.0
        %625 = vmatprep.subr.mxu0 0.0
        %626 = vmatpush1.msra.mxu0 0.0
        %627 = vmatprep.subr.mxu0 0.0
        %628 = vmatpush1.msra.mxu0 0.0
        %629 = vmatprep.subr.mxu0 0.0
        %630 = vmatpush1.msra.mxu0 0.0
        %631 = vmatprep.subr.mxu0 0.0
        %632 = vmatpush1.msra.mxu0 0.0
        %633 = vmatprep.subr.mxu0 0.0
        %634 = vmatpush1.msra.mxu0 0.0
        %635 = vmatprep.subr.mxu0 0.0
        %636 = vmatpush1.msra.mxu0 0.0
        %637 = vmatprep.subr.mxu0 0.0
        %638 = vmatpush1.msra.mxu0 0.0
        %639 = vmatprep.subr.mxu0 0.0
        %640 = vmatpush1.msra.mxu0 0.0
        %641 = vmatprep.mubr.f32.mxu0 0.0
        %642 = vmatmul.mubr.f32.gmra.mrb[0].mxu0 %v422
        %v643 = vpop.f32.mrb[0].mxu0
        %v644 = vadd.f32 %v569, %v643
        %v645 = vpop.f32.mrb[0].mxu0
        %646 = vmatprep.mubr.f32.mxu0 0.0
        %647 = vmatmul.mubr.f32.gmra.mrb[0].mxu0 %v425
        %v648 = vpop.f32.mrb[0].mxu0
        %v649 = vadd.f32 %v574, %v648
        %v650 = vpop.f32.mrb[0].mxu0
        %651 = vdwg.mxu0
        %v652 = vtanh.pop %v644
        %v653 = vtanh.pop %v649
        %v654 = vld [vmem:[%s5] sm:$0xff]
        %v655 = vld [vmem:[%s5 + $0x8] sm:$0xff]
        %v656 = vld [vmem:[%s5 + $0x10] sm:$0xff]
        %v657 = vld [vmem:[%s5 + $0x18] sm:$0xff]
        %v658 = vld [vmem:[%s5 + $0x20] sm:$0xff]
        %v659 = vld [vmem:[%s5 + $0x28] sm:$0xff]
        %v660 = vld [vmem:[%s5 + $0x30] sm:$0xff]
        %v661 = vld [vmem:[%s5 + $0x38] sm:$0xff]
        %v662 = vld [vmem:[%s5 + $0x40] sm:$0xff]
        %v663 = vld [vmem:[%s5 + $0x48] sm:$0xff]
        %v664 = vld [vmem:[%s5 + $0x50] sm:$0xff]
        %v665 = vld [vmem:[%s5 + $0x58] sm:$0xff]
        %v666 = vld [vmem:[%s5 + $0x60] sm:$0xf]
        %v667 = vstv %s328
        %vm668 = vcmask 818176
        %v670 = vsel %vm668, %v652, 0
        %v673 = vsel %vm668, %v653, 0
        %vm675 = vcmask 1043456
        %v677 = vsel %vm675, %v666, 0
        %679 = vmatprep.subr.mxu0 0.0
        %680 = vmatpush1.msra.mxu0 %v654
        %681 = vmatprep.subr.mxu0 0.0
        %682 = vmatpush1.msra.mxu0 %v655
        %683 = vmatprep.subr.mxu0 0.0
        %684 = vmatpush1.msra.mxu0 %v656
        %685 = vmatprep.subr.mxu0 0.0
        %686 = vmatpush1.msra.mxu0 %v657
        %687 = vmatprep.subr.mxu0 0.0
        %688 = vmatpush1.msra.mxu0 %v658
        %689 = vmatprep.subr.mxu0 0.0
        %690 = vmatpush1.msra.mxu0 %v659
        %691 = vmatprep.subr.mxu0 0.0
        %692 = vmatpush1.msra.mxu0 %v660
        %693 = vmatprep.subr.mxu0 0.0
        %694 = vmatpush1.msra.mxu0 %v661
        %695 = vmatprep.subr.mxu0 0.0
        %696 = vmatpush1.msra.mxu0 %v662
        %697 = vmatprep.subr.mxu0 0.0
        %698 = vmatpush1.msra.mxu0 %v663
        %699 = vmatprep.subr.mxu0 0.0
        %700 = vmatpush1.msra.mxu0 %v664
        %701 = vmatprep.subr.mxu0 0.0
        %702 = vmatpush1.msra.mxu0 %v665
        %703 = vmatprep.subr.mxu0 0.0
        %704 = vmatpush1.msra.mxu0 %v677
        %705 = vmatprep.subr.mxu0 0.0
        %706 = vmatpush1.msra.mxu0 0.0
        %707 = vmatprep.subr.mxu0 0.0
        %708 = vmatpush1.msra.mxu0 0.0
        %709 = vmatprep.subr.mxu0 0.0
        %710 = vmatpush1.msra.mxu0 0.0
        %711 = vmatprep.subr.mxu0 0.0
        %712 = vmatpush1.msra.mxu0 0.0
        %713 = vmatprep.subr.mxu0 0.0
        %714 = vmatpush1.msra.mxu0 0.0
        %715 = vmatprep.subr.mxu0 0.0
        %716 = vmatpush1.msra.mxu0 0.0
        %717 = vmatprep.subr.mxu0 0.0
        %718 = vmatpush1.msra.mxu0 0.0
        %719 = vmatprep.subr.mxu0 0.0
        %720 = vmatpush1.msra.mxu0 0.0
        %721 = vmatprep.subr.mxu0 0.0
        %722 = vmatpush1.msra.mxu0 0.0
        %723 = vmatprep.subr.mxu0 0.0
        %724 = vmatpush1.msra.mxu0 0.0
        %725 = vmatprep.subr.mxu0 0.0
        %726 = vmatpush1.msra.mxu0 0.0
        %727 = vmatprep.subr.mxu0 0.0
        %728 = vmatpush1.msra.mxu0 0.0
        %729 = vmatprep.subr.mxu0 0.0
        %730 = vmatpush1.msra.mxu0 0.0
        %731 = vmatprep.subr.mxu0 0.0
        %732 = vmatpush1.msra.mxu0 0.0
        %733 = vmatprep.subr.mxu0 0.0
        %734 = vmatpush1.msra.mxu0 0.0
        %735 = vmatprep.subr.mxu0 0.0
        %736 = vmatpush1.msra.mxu0 0.0
        %737 = vmatprep.subr.mxu0 0.0
        %738 = vmatpush1.msra.mxu0 0.0
        %739 = vmatprep.subr.mxu0 0.0
        %740 = vmatpush1.msra.mxu0 0.0
        %741 = vmatprep.subr.mxu0 0.0
        %742 = vmatpush1.msra.mxu0 0.0
        %743 = vmatprep.mubr.f32.mxu0 0.0
        %744 = vmatmul.mubr.f32.gmra.mrb[0].mxu0 %v670
        %v745 = vpop.f32.mrb[0].mxu0
        %v746 = vadd.f32 %v667, %v745
        %v747 = vpop.f32.mrb[0].mxu0
        %748 = vmatprep.mubr.f32.mxu0 0.0
        %749 = vmatmul.mubr.f32.gmra.mrb[0].mxu0 %v673
        %v750 = vpop.f32.mrb[0].mxu0
        %v751 = vadd.f32 %v667, %v750
        %v752 = vpop.f32.mrb[0].mxu0
        %753 = vdwg.mxu0
        %v754 = vld [vmem:[%s313] sm:$0xff]
        %v755 = vld [vmem:[%s313 + $0x8] sm:$0x3]
        %v756 = vstv %s327
        %v757 = vmul.f32 %v754, %v756
        %v758 = vmul.f32 %v755, %v756
        %vm759 = vcmask 162816
        %v760 = vsel %vm759, %v757, -inf
        %761 = vmax.xlane.f32.xlu0 %v760
        %v762 = vpop.xlane.xlu0 %761
        %vm763 = vcmask 156672
        %v764 = vsel %vm763, %v758, -inf
        %765 = vmax.xlane.f32.xlu0 %v764
        %v766 = vpop.xlane.xlu0 %765
        %v767 = vsub.f32 %v757, %v762
        %v768 = vsub.f32 %v758, %v766
        %v769 = vmul.f32 %v767, 1.442695
        %v770 = vpow.pop %v769
        %v771 = vmul.f32 %v768, 1.442695
        %v772 = vpow.pop %v771
        %v773 = vsel %vm759, %v770, 0.0
        %774 = vadd.xlane.f32.xlu0 %v773
        %v775 = vpop.xlane.xlu0 %774
        %v776 = vsel %vm763, %v772, 0.0
        %777 = vadd.xlane.f32.xlu0 %v776
        %v778 = vpop.xlane.xlu0 %777
        %v779 = vrcp.pop %v775
        %v780 = vmul.f32 %v770, %v779
        %v781 = vrcp.pop %v778
        %v782 = vmul.f32 %v772, %v781
        %v783 = vmul.f32 %v780, %v746
        %v784 = vmul.f32 %v782, %v751
        %v785 = vsel %vm759, %v783, 0.0
        %786 = vadd.xlane.f32.xlu0 %v785
        %v787 = vpop.xlane.xlu0 %786
        %v788 = vsel %vm763, %v784, 0.0
        %789 = vadd.xlane.f32.xlu0 %v788
        %v790 = vpop.xlane.xlu0 %789
        %v791 = vld [vmem:[%s321] sm:$0x1]
        %v794 = vunpack.c.l.s4 1966171168
        %v795 = vunpack.c.0.s8 %v794
        %v796 = vlaneseq
        %v797 = vshrl.u32 %v796, 7
        %v798 = vsub.s32 %v795, %v797
        %v799 = vrot.slane %v330, %v798
        %v800 = vcombine.high %v799, %v799
        %v802 = vunpack.c.l.s4 1966171168
        %v803 = vunpack.c.0.s8 %v802
        %v804 = vlaneseq
        %v805 = vshrl.u32 %v804, 7
        %v806 = vsub.s32 %v803, %v805
        %v807 = vrot.slane %v800, %v806
        %v809 = vmul.f32 %v791, %v807
        %vm810 = vcmask 73728
        %v811 = vsel %vm810, %v809, 0.0
        %812 = vadd.xlane.f32.xlu0 %v811
        %v813 = vpop.xlane.xlu0 %812
        %v814 = vlaneseq
        %v815 = vshrl.u32 %v814, 7
        %v816 = vsub.s32 0, %v815
        %v817 = vrot.slane %v813, %v816
        %v818 = vmul.f32 %v787, %v817
        %v819 = vmul.f32 %v790, %v817
        %v820 = vstv %s329
        %v821 = vadd.f32 %v818, %v820
        %v822 = vadd.f32 %v819, %v820
        %vm823 = vcmask 7168
        %824 = vst.msk [vmem:[%s326] sm:$0xff] %vm823, %v821
        %vm825 = vcmask 1024
        %826 = vst.msk [vmem:[%s326 + $0x8] sm:$0x3] %vm825, %v822
        %p827 = scmp.lt.s32.totalorder %s19, 3
        %s828 = scalar_select %p827, %s19, 3
        %s829 = smul.addr %s828, 2
        %s830 = smul.addr %s829, 8
        %s831 = scalar_lea.vmem %s7, %s830
        // Predicated region
        $region53: #{nprf_drmm_forward.1} parent=47 // pred_check
          %p832 = pneg %p199
        $region54: #{nprf_drmm_forward.1} parent=47 // pred_check_branch
          %834 = sbr.rel (%p832) target = $region56
        $region55: #{nprf_drmm_forward.1} parent=47 // pred_region
          _
        $region56: #{nprf_drmm_forward.1} parent=47 // pred_fallthru
          _
      $region48: #{nprf_drmm_forward.1} parent=5 // pred_fallthru
        _
      %p835 = scmp.le.s32.totalorder 2, %s14
      // Predicated region
      $region57: #{nprf_drmm_forward.1} parent=5 // pred_check
        %p836 = pneg %p835
      $region58: #{nprf_drmm_forward.1} parent=5 // pred_check_branch
        %838 = sbr.rel (%p836) target = $region60
      $region59: #{nprf_drmm_forward.1} parent=5 // pred_region
        %s839 = ssub.s32 %s14, 2
        // Predicated region
        $region61: #{nprf_drmm_forward.1} parent=59 // pred_check
          %p840 = pneg %p205
        $region62: #{nprf_drmm_forward.1} parent=59 // pred_check_branch
          %842 = sbr.rel (%p840) target = $region64
        $region63: #{nprf_drmm_forward.1} parent=59 // pred_region
          %p843 = scmp.lt.s32.totalorder %s20, 3
          %s844 = scalar_select %p843, %s20, 3
          %s845 = smul.addr %s844, 2
          %s846 = smul.addr %s845, 8
          %s847 = scalar_lea.vmem %s7, %s846
        $region64: #{nprf_drmm_forward.1} parent=59 // pred_fallthru
          _
      $region60: #{nprf_drmm_forward.1} parent=5 // pred_fallthru
        _
    $region6: #{nprf_drmm_forward.1} parent=1 // loop_footer
      %s18 = sadd.s32 1, %s14
    $region7: #{nprf_drmm_forward.1} parent=1 // loop_footer_branch
      %13 = sbr.rel target = $region3
    $region8: #{nprf_drmm_forward.1} parent=1 // loop_exit
      _
    %848 = vsyncpa [#allocation3], 1
    %s849 = scalar_lea.sflag [#allocation3], 1
    %850 = vsyncpa %s849, 1

</llo_original>
